<compile_context>
chip_gen: v5e
topology: v5e:2x2
jax: 0.10.0
libtpu: 0.0.40
codegen_flags: <defaults>
</compile_context>

<pallas_src>
import functools

import jax
import jax.numpy as jnp
from jax.experimental import pallas as pl
from jax.experimental.pallas import tpu as pltpu

LANE = 128  # lane width: node axis and all feature axes are padded to multiples of this.


def _ceil_to(n: int, m: int) -> int:
    return ((n + m - 1) // m) * m


# ----------------------------- Pallas kernel ------------------------------ #
def mgcl_fused_kernel(
    a2_ref,                       # [NP, NP]        bf16  A_hat^k (k = 2), zero-padded
    x_ref,                        # [NP, Fin_p]     bf16  padded node features
    w1f_ref, b1f_ref,             # [Fin_p, 2H] bf16, [1, 2H] f32   (online || target)
    w2f_ref, b2f_ref,             # [2H, 2O]   bf16, [1, 2O] f32   (block-diagonal)
    wp1_ref, bp1_ref,             # predictor layer 1
    wp2_ref, bp2_ref,             # predictor layer 2
    out_ref,                      # [NP, 3O] f32: [h1 | h2 | h1_pred] lane-dense slab
):
    a2 = a2_ref[...]              # bf16
    x = x_ref[...]                # bf16
    out_half = w2f_ref.shape[1] // 2   # static: padded out_dim (=128)

    # ---- layer 1, both encoders fused (256-wide RHS) ----
    # h = ReLU( A^2 @ (x @ [W1 || W1t]) + [b1 || b1t] )
    z1 = jnp.dot(x, w1f_ref[...], preferred_element_type=jnp.float32)
    h = jnp.dot(a2, z1.astype(jnp.bfloat16),
                preferred_element_type=jnp.float32) + b1f_ref[...]
    h = jnp.maximum(h, 0.0)

    # ---- layer 2, block-diagonal fused weights ----
    # hh = A^2 @ (h @ [[W2,0],[0,W2t]]) + [b2 || b2t]   -> columns [:O]=h1, [O:2O]=h2
    z2 = jnp.dot(h.astype(jnp.bfloat16), w2f_ref[...],
                 preferred_element_type=jnp.float32)
    hh = jnp.dot(a2, z2.astype(jnp.bfloat16),
                 preferred_element_type=jnp.float32) + b2f_ref[...]
    out_ref[:, : 2 * out_half] = hh                      # h1 || h2 (256-lane dense store)

    # ---- predictor: Linear -> ELU -> Linear on h1 (still resident in vregs) ----
    h1 = hh[:, :out_half]
    p = jnp.dot(h1.astype(jnp.bfloat16), wp1_ref[...],
                preferred_element_type=jnp.float32) + bp1_ref[...]
    p = jnp.where(p > 0.0, p, jnp.exp(jnp.minimum(p, 0.0)) - 1.0)   # ELU(alpha=1), f32
    pred = jnp.dot(p.astype(jnp.bfloat16), wp2_ref[...],
                   preferred_element_type=jnp.float32) + bp2_ref[...]
    out_ref[:, 2 * out_half:] = pred                     # 128-lane dense store


def mgcl_fused(a2_bf16, x_bf16, pp):
    np_ = x_bf16.shape[0]
    out_half = pp["w2f"].shape[1] // 2
    args = (a2_bf16, x_bf16,
            pp["w1f"], pp["b1f"], pp["w2f"], pp["b2f"],
            pp["wp1"], pp["bp1"], pp["wp2"], pp["bp2"])
    return pl.pallas_call(
        mgcl_fused_kernel,
        out_shape=jax.ShapeDtypeStruct((np_, 3 * out_half), jnp.float32),
        in_specs=[pl.BlockSpec(memory_space=pltpu.VMEM)] * len(args),
        out_specs=pl.BlockSpec(memory_space=pltpu.VMEM),
    )(*args)


# ------------------------------ plain-JAX glue ----------------------------- #
def build_normalized_adjacency(edge_index, num_nodes):
    """Dense A_hat = D^{-1/2}(A + I)D^{-1/2}; scatter build (no one-hot matmuls)."""
    src, dst = edge_index[0], edge_index[1]
    a = jnp.zeros((num_nodes, num_nodes), jnp.float32)
    a = a.at[src, dst].set(1.0)            # duplicate edges collapse to 1.0 (.set semantics)
    a = jnp.maximum(a, a.T)                # symmetrize (undirected)
    a = a + jnp.eye(num_nodes, dtype=jnp.float32)        # self loops
    deg = jnp.sum(a, axis=1)
    d_inv_sqrt = jax.lax.rsqrt(jnp.maximum(deg, 1e-12))
    return a * d_inv_sqrt[:, None] * d_inv_sqrt[None, :]


def init_params(key, in_ch, hid_ch, out_dim, pred_dim):
    """Glorot-style init for the 2-layer GCN encoder and the 2-layer predictor."""
    ks = jax.random.split(key, 4)

    def glorot(k, fi, fo):
        return jax.random.normal(k, (fi, fo), jnp.float32) * jnp.sqrt(2.0 / (fi + fo))

    return {
        "enc": {
            "w1": glorot(ks[0], in_ch, hid_ch), "b1": jnp.zeros((hid_ch,), jnp.float32),
            "w2": glorot(ks[1], hid_ch, out_dim), "b2": jnp.zeros((out_dim,), jnp.float32),
        },
        "pred": {
            "w1": glorot(ks[2], out_dim, pred_dim), "b1": jnp.zeros((pred_dim,), jnp.float32),
            "w2": glorot(ks[3], pred_dim, out_dim), "b2": jnp.zeros((out_dim,), jnp.float32),
        },
    }


def make_target_encoder(enc_params, key, eta=0.1, aug_type="Noise"):
    """get_target_encoder(): deepcopy of the online encoder, optional 'Noise' aug."""
    if aug_type != "Noise":
        return dict(enc_params)
    names = sorted(enc_params.keys())
    keys = jax.random.split(key, len(names))
    out = {}
    for name, k in zip(names, keys):
        p = enc_params[name]
        std = jnp.nan_to_num(jnp.std(p, ddof=1)) if p.size > 1 else jnp.float32(0.0)
        out[name] = p + eta * std * jax.random.normal(k, p.shape, p.dtype)
    return out


def _pad2(w, rows, cols):
    r, c = w.shape
    return jnp.pad(w, ((0, rows - r), (0, cols - c)))


def _pad1(b, cols):
    (c,) = b.shape
    return jnp.pad(b, (0, cols - c))


def prepare_fused_params(online_enc, target_enc, pred, in_ch, hid_ch, out_dim, pred_dim):
    """Build the fused (online||target) weights once, padded to 128 lanes, bf16 for MXU."""
    fin_p = _ceil_to(in_ch, LANE)
    hid_p = _ceil_to(hid_ch, LANE)
    out_p = _ceil_to(out_dim, LANE)
    prd_p = _ceil_to(pred_dim, LANE)

    # Layer 1: concatenate along the output axis -> (Fin_p, 2*hid_p).
    w1f = jnp.concatenate(
        [_pad2(online_enc["w1"], fin_p, hid_p), _pad2(target_enc["w1"], fin_p, hid_p)],
        axis=1).astype(jnp.bfloat16)
    b1f = jnp.concatenate(
        [_pad1(online_enc["b1"], hid_p), _pad1(target_enc["b1"], hid_p)]
    ).reshape(1, -1).astype(jnp.float32)

    # Layer 2: block-diagonal [[W2, 0], [0, W2t]] -> (2*hid_p, 2*out_p).
    w2f = jnp.zeros((2 * hid_p, 2 * out_p), jnp.float32)
    w2f = w2f.at[:hid_ch, :out_dim].set(online_enc["w2"])
    w2f = w2f.at[hid_p:hid_p + hid_ch, out_p:out_p + out_dim].set(target_enc["w2"])
    w2f = w2f.astype(jnp.bfloat16)
    b2f = jnp.concatenate(
        [_pad1(online_enc["b2"], out_p), _pad1(target_enc["b2"], out_p)]
    ).reshape(1, -1).astype(jnp.float32)

    return {
        "w1f": w1f, "b1f": b1f, "w2f": w2f, "b2f": b2f,
        "wp1": _pad2(pred["w1"], out_p, prd_p).astype(jnp.bfloat16),
        "bp1": _pad1(pred["b1"], prd_p).reshape(1, -1).astype(jnp.float32),
        "wp2": _pad2(pred["w2"], prd_p, out_p).astype(jnp.bfloat16),
        "bp2": _pad1(pred["b2"], out_p).reshape(1, -1).astype(jnp.float32),
    }


@functools.partial(jax.jit, static_argnames=("fix_k", "out_dim"))
def mgcl_forward(fused_params, x, edge_index, fix_k=2, out_dim=8):
    """MGCL.forward in eval mode: returns (h1, h2, h1_pred)."""
    n, f_in = x.shape
    a_hat = build_normalized_adjacency(edge_index, n)
    a_k = a_hat
    for _ in range(fix_k - 1):                 # A_hat^fix_k (fix_k static; =2 here)
        a_k = a_k @ a_hat

    np_ = _ceil_to(n, LANE)                    # pad node axis to the lane width
    fin_p = fused_params["w1f"].shape[0]
    a_k_pad = jnp.pad(a_k, ((0, np_ - n), (0, np_ - n))).astype(jnp.bfloat16)
    x_pad = jnp.pad(x, ((0, np_ - n), (0, fin_p - f_in))).astype(jnp.bfloat16)

    out = mgcl_fused(a_k_pad, x_pad, fused_params)
    out_p = fused_params["w2f"].shape[1] // 2
    h1 = out[:n, :out_dim]
    h2 = out[:n, out_p:out_p + out_dim]
    h1_pred = out[:n, 2 * out_p:2 * out_p + out_dim]
    return h1, h2, h1_pred


# ---------------------------------- main ----------------------------------- #
if __name__ == "__main__":
    key = jax.random.PRNGKey(0)
    k_x, k_e, k_p, k_n = jax.random.split(key, 4)

    num_nodes, num_edges = 64, 128
    in_ch, hid_ch, out_dim, pred_dim = 16, 32, 8, 16

    x = jax.random.normal(k_x, (num_nodes, in_ch), jnp.float32)
    edge_index = jax.random.randint(k_e, (2, num_edges), 0, num_nodes, jnp.int32)

    params = init_params(k_p, in_ch, hid_ch, out_dim, pred_dim)
    target_enc = make_target_encoder(params["enc"], k_n, eta=0.1, aug_type="Noise")
    fused = prepare_fused_params(params["enc"], target_enc, params["pred"],
                                 in_ch, hid_ch, out_dim, pred_dim)

    h1, h2, h1_pred = mgcl_forward(fused, x, edge_index, fix_k=2, out_dim=out_dim)
    (h1, h2, h1_pred) = jax.block_until_ready((h1, h2, h1_pred))

    assert h1.shape == (num_nodes, out_dim)
    assert h2.shape == (num_nodes, out_dim)
    assert h1_pred.shape == (num_nodes, out_dim)
    assert bool(jnp.all(jnp.isfinite(h1)))
    assert bool(jnp.all(jnp.isfinite(h2)))
    assert bool(jnp.all(jnp.isfinite(h1_pred)))
    print("KERNEL_OK")
</pallas_src>

<mosaic_0001>
module attributes {stable_mosaic.version = 11 : i64} {
  func.func @mgcl_fused_kernel(%arg0: memref<128x128xbf16, #tpu.memory_space<vmem>>, %arg1: memref<128x128xbf16, #tpu.memory_space<vmem>>, %arg2: memref<128x256xbf16, #tpu.memory_space<vmem>>, %arg3: memref<1x256xf32, #tpu.memory_space<vmem>>, %arg4: memref<256x256xbf16, #tpu.memory_space<vmem>>, %arg5: memref<1x256xf32, #tpu.memory_space<vmem>>, %arg6: memref<128x128xbf16, #tpu.memory_space<vmem>>, %arg7: memref<1x128xf32, #tpu.memory_space<vmem>>, %arg8: memref<128x128xbf16, #tpu.memory_space<vmem>>, %arg9: memref<1x128xf32, #tpu.memory_space<vmem>>, %arg10: memref<128x384xf32, #tpu.memory_space<vmem>>) attributes {dimension_semantics = [], scalar_prefetch = 0 : i64, scratch_operands = 0 : i64, tpu.core_type = #tpu.core_type<tc>} {
    %c0 = arith.constant 0 : index
    %c0_0 = arith.constant 0 : index
    %0 = vector.load %arg0[%c0, %c0_0] : memref<128x128xbf16, #tpu.memory_space<vmem>>, vector<128x128xbf16>
    %c0_1 = arith.constant 0 : index
    %c0_2 = arith.constant 0 : index
    %1 = vector.load %arg1[%c0_1, %c0_2] : memref<128x128xbf16, #tpu.memory_space<vmem>>, vector<128x128xbf16>
    %c0_3 = arith.constant 0 : index
    %c0_4 = arith.constant 0 : index
    %2 = vector.load %arg2[%c0_3, %c0_4] : memref<128x256xbf16, #tpu.memory_space<vmem>>, vector<128x256xbf16>
    %cst = arith.constant dense<0.000000e+00> : vector<128x256xf32>
    %3 = tpu.matmul %1, %2, %cst {dimension_numbers = #tpu.dot_dimension_numbers<[1], [0], [0], [1], [0, 0, 1, 1], [], []>} : vector<128x128xbf16>, vector<128x256xbf16>, vector<128x256xf32> -> vector<128x256xf32>
    %4 = arith.truncf %3 : vector<128x256xf32> to vector<128x256xbf16>
    %cst_5 = arith.constant dense<0.000000e+00> : vector<128x256xf32>
    %5 = tpu.matmul %0, %4, %cst_5 {dimension_numbers = #tpu.dot_dimension_numbers<[1], [0], [0], [1], [0, 0, 1, 1], [], []>} : vector<128x128xbf16>, vector<128x256xbf16>, vector<128x256xf32> -> vector<128x256xf32>
    %c0_6 = arith.constant 0 : index
    %c0_7 = arith.constant 0 : index
    %6 = vector.load %arg3[%c0_6, %c0_7] : memref<1x256xf32, #tpu.memory_space<vmem>>, vector<1x256xf32>
    %7 = vector.broadcast %6 : vector<1x256xf32> to vector<128x256xf32>
    %8 = arith.addf %5, %7 : vector<128x256xf32>
    %cst_8 = arith.constant 0.000000e+00 : f32
    %9 = vector.broadcast %cst_8 : f32 to vector<128x256xf32>
    %10 = arith.maximumf %8, %9 : vector<128x256xf32>
    %11 = arith.truncf %10 : vector<128x256xf32> to vector<128x256xbf16>
    %c0_9 = arith.constant 0 : index
    %c0_10 = arith.constant 0 : index
    %12 = vector.load %arg4[%c0_9, %c0_10] : memref<256x256xbf16, #tpu.memory_space<vmem>>, vector<256x256xbf16>
    %cst_11 = arith.constant dense<0.000000e+00> : vector<128x256xf32>
    %13 = tpu.matmul %11, %12, %cst_11 {dimension_numbers = #tpu.dot_dimension_numbers<[1], [0], [0], [1], [0, 0, 1, 1], [], []>} : vector<128x256xbf16>, vector<256x256xbf16>, vector<128x256xf32> -> vector<128x256xf32>
    %14 = arith.truncf %13 : vector<128x256xf32> to vector<128x256xbf16>
    %cst_12 = arith.constant dense<0.000000e+00> : vector<128x256xf32>
    %15 = tpu.matmul %0, %14, %cst_12 {dimension_numbers = #tpu.dot_dimension_numbers<[1], [0], [0], [1], [0, 0, 1, 1], [], []>} : vector<128x128xbf16>, vector<128x256xbf16>, vector<128x256xf32> -> vector<128x256xf32>
    %c0_13 = arith.constant 0 : index
    %c0_14 = arith.constant 0 : index
    %16 = vector.load %arg5[%c0_13, %c0_14] : memref<1x256xf32, #tpu.memory_space<vmem>>, vector<1x256xf32>
    %17 = vector.broadcast %16 : vector<1x256xf32> to vector<128x256xf32>
    %18 = arith.addf %15, %17 : vector<128x256xf32>
    %c0_15 = arith.constant 0 : index
    %c0_16 = arith.constant 0 : index
    %19 = vector.load %arg10[%c0_15, %c0_16] : memref<128x384xf32, #tpu.memory_space<vmem>>, vector<128x256xf32>
    tpu.vector_store %arg10[%c0_15, %c0_16], %18 {strides = array<i32>} : memref<128x384xf32, #tpu.memory_space<vmem>>, vector<128x256xf32>,
    %20 = vector.extract_strided_slice %18 {offsets = [0, 0], sizes = [128, 128], strides = [1, 1]} : vector<128x256xf32> to vector<128x128xf32>
    %21 = arith.truncf %20 : vector<128x128xf32> to vector<128x128xbf16>
    %c0_17 = arith.constant 0 : index
    %c0_18 = arith.constant 0 : index
    %22 = vector.load %arg6[%c0_17, %c0_18] : memref<128x128xbf16, #tpu.memory_space<vmem>>, vector<128x128xbf16>
    %cst_19 = arith.constant dense<0.000000e+00> : vector<128x128xf32>
    %23 = tpu.matmul %21, %22, %cst_19 {dimension_numbers = #tpu.dot_dimension_numbers<[1], [0], [0], [1], [0, 0, 1, 1], [], []>} : vector<128x128xbf16>, vector<128x128xbf16>, vector<128x128xf32> -> vector<128x128xf32>
    %c0_20 = arith.constant 0 : index
    %c0_21 = arith.constant 0 : index
    %24 = vector.load %arg7[%c0_20, %c0_21] : memref<1x128xf32, #tpu.memory_space<vmem>>, vector<1x128xf32>
    %25 = vector.broadcast %24 : vector<1x128xf32> to vector<128x128xf32>
    %26 = arith.addf %23, %25 : vector<128x128xf32>
    %cst_22 = arith.constant 0.000000e+00 : f32
    %27 = vector.broadcast %cst_22 : f32 to vector<128x128xf32>
    %28 = arith.cmpf ogt, %26, %27 : vector<128x128xf32>
    %cst_23 = arith.constant 0.000000e+00 : f32
    %29 = vector.broadcast %cst_23 : f32 to vector<128x128xf32>
    %30 = arith.minimumf %26, %29 : vector<128x128xf32>
    %31 = math.exp %30 : vector<128x128xf32>
    %cst_24 = arith.constant 1.000000e+00 : f32
    %32 = vector.broadcast %cst_24 : f32 to vector<128x128xf32>
    %33 = arith.subf %31, %32 : vector<128x128xf32>
    %34 = arith.select %28, %26, %33 : vector<128x128xi1>, vector<128x128xf32>
    %35 = arith.truncf %34 : vector<128x128xf32> to vector<128x128xbf16>
    %c0_25 = arith.constant 0 : index
    %c0_26 = arith.constant 0 : index
    %36 = vector.load %arg8[%c0_25, %c0_26] : memref<128x128xbf16, #tpu.memory_space<vmem>>, vector<128x128xbf16>
    %cst_27 = arith.constant dense<0.000000e+00> : vector<128x128xf32>
    %37 = tpu.matmul %35, %36, %cst_27 {dimension_numbers = #tpu.dot_dimension_numbers<[1], [0], [0], [1], [0, 0, 1, 1], [], []>} : vector<128x128xbf16>, vector<128x128xbf16>, vector<128x128xf32> -> vector<128x128xf32>
    %c0_28 = arith.constant 0 : index
    %c0_29 = arith.constant 0 : index
    %38 = vector.load %arg9[%c0_28, %c0_29] : memref<1x128xf32, #tpu.memory_space<vmem>>, vector<1x128xf32>
    %39 = vector.broadcast %38 : vector<1x128xf32> to vector<128x128xf32>
    %40 = arith.addf %37, %39 : vector<128x128xf32>
    %c0_30 = arith.constant 0 : index
    %c256 = arith.constant 256 : index
    %41 = vector.load %arg10[%c0_30, %c256] : memref<128x384xf32, #tpu.memory_space<vmem>>, vector<128x128xf32>
    tpu.vector_store %arg10[%c0_30, %c256], %40 {strides = array<i32>} : memref<128x384xf32, #tpu.memory_space<vmem>>, vector<128x128xf32>,
    return
  }
}

</mosaic_0001>

<llo_original>
// kernel: mgcl_forward.1
$region0: #{mgcl_forward.1}
  #allocation0 [shape = 'u32[]', space=smem, size = 0x4, offset = 0x4, fixed_abs, tag = 'smem constant byte address 0x4 - core index']
  #allocation1 [shape = 'u32[72,128]{1,0:T(1,128)}', space=vmem, size = 0x9000, scoped, tag = 'internal scratch']
  %s0 = inlined_call_operand.vmem [shape: bf16[128,128], index: 0, kind: input, shape index: {}]
  %s1 = inlined_call_operand.vmem [shape: bf16[128,128], index: 1, kind: input, shape index: {}]
  %s2 = inlined_call_operand.vmem [shape: bf16[128,256], index: 2, kind: input, shape index: {}]
  %s3 = inlined_call_operand.vmem [shape: f32[1,256], index: 3, kind: input, shape index: {}]
  %s4 = inlined_call_operand.vmem [shape: bf16[256,256], index: 4, kind: input, shape index: {}]
  %s5 = inlined_call_operand.vmem [shape: f32[1,256], index: 5, kind: input, shape index: {}]
  %s6 = inlined_call_operand.vmem [shape: bf16[128,128], index: 6, kind: input, shape index: {}]
  %s7 = inlined_call_operand.vmem [shape: f32[1,128], index: 7, kind: input, shape index: {}]
  %s8 = inlined_call_operand.vmem [shape: bf16[128,128], index: 8, kind: input, shape index: {}]
  %s9 = inlined_call_operand.vmem [shape: f32[1,128], index: 9, kind: input, shape index: {}]
  %s10 = inlined_call_operand.vmem [shape: f32[128,384], index: 10, kind: output, shape index: {}]
  %s11 = sld [smem:[#allocation0]]
  $region50: #{mgcl_forward.1} parent=0
    _
  %s13 = ssub.s32 1, %s11
  %s14 = scalar_select 0, %s13, %s11
  // Predicated region
  $region2: #{mgcl_forward.1} parent=0 // pred_check
    _
  $region3: #{mgcl_forward.1} parent=0 // pred_check_branch
    %16 = sbr.rel (0) target = $region5
  $region4: #{mgcl_forward.1} parent=0 // pred_region
    _
  $region5: #{mgcl_forward.1} parent=0 // pred_fallthru
    _
  // Predicated region
  $region6: #{mgcl_forward.1} parent=0 // pred_check
    _
  $region7: #{mgcl_forward.1} parent=0 // pred_check_branch
    %18 = sbr.rel (0) target = $region9
  $region8: #{mgcl_forward.1} parent=0 // pred_region
    _
  $region9: #{mgcl_forward.1} parent=0 // pred_fallthru
    _
  // Predicated region
  $region10: #{mgcl_forward.1} parent=0 // pred_check
    _
  $region11: #{mgcl_forward.1} parent=0 // pred_check_branch
    %20 = sbr.rel (0) target = $region13
  $region12: #{mgcl_forward.1} parent=0 // pred_region
    _
  $region13: #{mgcl_forward.1} parent=0 // pred_fallthru
    _
  // Predicated region
  $region14: #{mgcl_forward.1} parent=0 // pred_check
    _
  $region15: #{mgcl_forward.1} parent=0 // pred_check_branch
    %22 = sbr.rel (0) target = $region17
  $region16: #{mgcl_forward.1} parent=0 // pred_region
    _
  $region17: #{mgcl_forward.1} parent=0 // pred_fallthru
    _
  // Predicated region
  $region18: #{mgcl_forward.1} parent=0 // pred_check
    _
  $region19: #{mgcl_forward.1} parent=0 // pred_check_branch
    %24 = sbr.rel (0) target = $region21
  $region20: #{mgcl_forward.1} parent=0 // pred_region
    _
  $region21: #{mgcl_forward.1} parent=0 // pred_fallthru
    _
  // Predicated region
  $region22: #{mgcl_forward.1} parent=0 // pred_check
    _
  $region23: #{mgcl_forward.1} parent=0 // pred_check_branch
    %26 = sbr.rel (0) target = $region25
  $region24: #{mgcl_forward.1} parent=0 // pred_region
    _
  $region25: #{mgcl_forward.1} parent=0 // pred_fallthru
    _
  // Predicated region
  $region26: #{mgcl_forward.1} parent=0 // pred_check
    _
  $region27: #{mgcl_forward.1} parent=0 // pred_check_branch
    %28 = sbr.rel (0) target = $region29
  $region28: #{mgcl_forward.1} parent=0 // pred_region
    _
  $region29: #{mgcl_forward.1} parent=0 // pred_fallthru
    _
  // Predicated region
  $region30: #{mgcl_forward.1} parent=0 // pred_check
    _
  $region31: #{mgcl_forward.1} parent=0 // pred_check_branch
    %30 = sbr.rel (0) target = $region33
  $region32: #{mgcl_forward.1} parent=0 // pred_region
    _
  $region33: #{mgcl_forward.1} parent=0 // pred_fallthru
    _
  // Predicated region
  $region34: #{mgcl_forward.1} parent=0 // pred_check
    _
  $region35: #{mgcl_forward.1} parent=0 // pred_check_branch
    %32 = sbr.rel (0) target = $region37
  $region36: #{mgcl_forward.1} parent=0 // pred_region
    _
  $region37: #{mgcl_forward.1} parent=0 // pred_fallthru
    _
  // Predicated region
  $region38: #{mgcl_forward.1} parent=0 // pred_check
    _
  $region39: #{mgcl_forward.1} parent=0 // pred_check_branch
    %34 = sbr.rel (0) target = $region41
  $region40: #{mgcl_forward.1} parent=0 // pred_region
    _
  $region41: #{mgcl_forward.1} parent=0 // pred_fallthru
    _
  %v35 = vld [vmem:[%s0] sm:$0xf]
  %v36 = vld [vmem:[%s0 + $0x4] sm:$0xf]
  %v37 = vld [vmem:[%s0 + $0x8] sm:$0xf]
  %v38 = vld [vmem:[%s0 + $0xc] sm:$0xf]
  %v39 = vld [vmem:[%s0 + $0x10] sm:$0xf]
  %v40 = vld [vmem:[%s0 + $0x14] sm:$0xf]
  %v41 = vld [vmem:[%s0 + $0x18] sm:$0xf]
  %v42 = vld [vmem:[%s0 + $0x1c] sm:$0xf]
  %v43 = vld [vmem:[%s0 + $0x20] sm:$0xf]
  %v44 = vld [vmem:[%s0 + $0x24] sm:$0xf]
  %v45 = vld [vmem:[%s0 + $0x28] sm:$0xf]
  %v46 = vld [vmem:[%s0 + $0x2c] sm:$0xf]
  %v47 = vld [vmem:[%s0 + $0x30] sm:$0xf]
  %v48 = vld [vmem:[%s0 + $0x34] sm:$0xf]
  %v49 = vld [vmem:[%s0 + $0x38] sm:$0xf]
  %v50 = vld [vmem:[%s0 + $0x3c] sm:$0xf]
  %v51 = vld [vmem:[%s1] sm:$0xf]
  %v52 = vld [vmem:[%s1 + $0x4] sm:$0xf]
  %v53 = vld [vmem:[%s1 + $0x8] sm:$0xf]
  %v54 = vld [vmem:[%s1 + $0xc] sm:$0xf]
  %v55 = vld [vmem:[%s1 + $0x10] sm:$0xf]
  %v56 = vld [vmem:[%s1 + $0x14] sm:$0xf]
  %v57 = vld [vmem:[%s1 + $0x18] sm:$0xf]
  %v58 = vld [vmem:[%s1 + $0x1c] sm:$0xf]
  %v59 = vld [vmem:[%s1 + $0x20] sm:$0xf]
  %v60 = vld [vmem:[%s1 + $0x24] sm:$0xf]
  %v61 = vld [vmem:[%s1 + $0x28] sm:$0xf]
  %v62 = vld [vmem:[%s1 + $0x2c] sm:$0xf]
  %v63 = vld [vmem:[%s1 + $0x30] sm:$0xf]
  %v64 = vld [vmem:[%s1 + $0x34] sm:$0xf]
  %v65 = vld [vmem:[%s1 + $0x38] sm:$0xf]
  %v66 = vld [vmem:[%s1 + $0x3c] sm:$0xf]
  %v67 = vld [vmem:[%s2] sm:$0xff]
  %v68 = vld [vmem:[%s2 + $0x8] sm:$0xff]
  %v69 = vld [vmem:[%s2 + $0x10] sm:$0xff]
  %v70 = vld [vmem:[%s2 + $0x18] sm:$0xff]
  %v71 = vld [vmem:[%s2 + $0x20] sm:$0xff]
  %v72 = vld [vmem:[%s2 + $0x28] sm:$0xff]
  %v73 = vld [vmem:[%s2 + $0x30] sm:$0xff]
  %v74 = vld [vmem:[%s2 + $0x38] sm:$0xff]
  %v75 = vld [vmem:[%s2 + $0x40] sm:$0xff]
  %v76 = vld [vmem:[%s2 + $0x48] sm:$0xff]
  %v77 = vld [vmem:[%s2 + $0x50] sm:$0xff]
  %v78 = vld [vmem:[%s2 + $0x58] sm:$0xff]
  %v79 = vld [vmem:[%s2 + $0x60] sm:$0xff]
  %v80 = vld [vmem:[%s2 + $0x68] sm:$0xff]
  %v81 = vld [vmem:[%s2 + $0x70] sm:$0xff]
  %v82 = vld [vmem:[%s2 + $0x78] sm:$0xff]
  %v99 = vunpack.c.l.b16 %v51
  %v100 = vunpack.c.l.b16 %v52
  %v101 = vunpack.c.l.b16 %v53
  %v102 = vunpack.c.l.b16 %v54
  %v103 = vunpack.c.l.b16 %v55
  %v104 = vunpack.c.l.b16 %v56
  %v105 = vunpack.c.l.b16 %v57
  %v106 = vunpack.c.l.b16 %v58
  %v107 = vunpack.c.l.b16 %v59
  %v108 = vunpack.c.l.b16 %v60
  %v109 = vunpack.c.l.b16 %v61
  %v110 = vunpack.c.l.b16 %v62
  %v111 = vunpack.c.l.b16 %v63
  %v112 = vunpack.c.l.b16 %v64
  %v113 = vunpack.c.l.b16 %v65
  %v114 = vunpack.c.l.b16 %v66
  %v115 = vpack.c.b16 %v100, %v99
  %v116 = vpack.c.b16 %v102, %v101
  %v117 = vpack.c.b16 %v104, %v103
  %v118 = vpack.c.b16 %v106, %v105
  %v119 = vpack.c.b16 %v108, %v107
  %v120 = vpack.c.b16 %v110, %v109
  %v121 = vpack.c.b16 %v112, %v111
  %v122 = vpack.c.b16 %v114, %v113
  %v147 = vunpack.c.l.b16 %v67
  %v148 = vunpack.c.h.b16 %v67
  %v149 = vunpack.c.l.b16 %v68
  %v150 = vunpack.c.h.b16 %v68
  %v151 = vunpack.c.l.b16 %v69
  %v152 = vunpack.c.h.b16 %v69
  %v153 = vunpack.c.l.b16 %v70
  %v154 = vunpack.c.h.b16 %v70
  %v155 = vunpack.c.l.b16 %v71
  %v156 = vunpack.c.h.b16 %v71
  %v157 = vunpack.c.l.b16 %v72
  %v158 = vunpack.c.h.b16 %v72
  %v159 = vunpack.c.l.b16 %v73
  %v160 = vunpack.c.h.b16 %v73
  %v161 = vunpack.c.l.b16 %v74
  %v162 = vunpack.c.h.b16 %v74
  %v163 = vunpack.c.l.b16 %v75
  %v164 = vunpack.c.h.b16 %v75
  %v165 = vunpack.c.l.b16 %v76
  %v166 = vunpack.c.h.b16 %v76
  %v167 = vunpack.c.l.b16 %v77
  %v168 = vunpack.c.h.b16 %v77
  %v169 = vunpack.c.l.b16 %v78
  %v170 = vunpack.c.h.b16 %v78
  %v171 = vunpack.c.l.b16 %v79
  %v172 = vunpack.c.h.b16 %v79
  %v173 = vunpack.c.l.b16 %v80
  %v174 = vunpack.c.h.b16 %v80
  %v175 = vunpack.c.l.b16 %v81
  %v176 = vunpack.c.h.b16 %v81
  %v177 = vunpack.c.l.b16 %v82
  %v178 = vunpack.c.h.b16 %v82
  %v179 = vpack.c.b16 %v149, %v147
  %v180 = vpack.c.b16 %v150, %v148
  %v181 = vpack.c.b16 %v153, %v151
  %v182 = vpack.c.b16 %v154, %v152
  %v183 = vpack.c.b16 %v157, %v155
  %v184 = vpack.c.b16 %v158, %v156
  %v185 = vpack.c.b16 %v161, %v159
  %v186 = vpack.c.b16 %v162, %v160
  %v187 = vpack.c.b16 %v165, %v163
  %v188 = vpack.c.b16 %v166, %v164
  %v189 = vpack.c.b16 %v169, %v167
  %v190 = vpack.c.b16 %v170, %v168
  %v191 = vpack.c.b16 %v173, %v171
  %v192 = vpack.c.b16 %v174, %v172
  %v193 = vpack.c.b16 %v177, %v175
  %v194 = vpack.c.b16 %v178, %v176
  %211 = vmatpush.bf16.msra.mxu0 %v193
  %212 = vmatpush.bf16.msra.mxu0 %v191
  %213 = vmatpush.bf16.msra.mxu0 %v189
  %214 = vmatpush.bf16.msra.mxu0 %v187
  %215 = vmatpush.bf16.msra.mxu0 %v185
  %216 = vmatpush.bf16.msra.mxu0 %v183
  %217 = vmatpush.bf16.msra.mxu0 %v181
  %218 = vmatpush.bf16.msra.mxu0 %v179
  %219 = vmatmul.bf16.gmra.mxu0 %v115
  %v220 = vpop.f32.mrf.mxu0
  %v221 = vadd.f32 0.0, %v220
  %v222 = vpop.f32.mrf.mxu0
  %v223 = vadd.f32 0.0, %v222
  %224 = vmatmul.bf16.gmra.mxu0 %v116
  %v225 = vpop.f32.mrf.mxu0
  %v226 = vadd.f32 0.0, %v225
  %v227 = vpop.f32.mrf.mxu0
  %v228 = vadd.f32 0.0, %v227
  %229 = vmatmul.bf16.gmra.mxu0 %v117
  %v230 = vpop.f32.mrf.mxu0
  %v231 = vadd.f32 0.0, %v230
  %v232 = vpop.f32.mrf.mxu0
  %v233 = vadd.f32 0.0, %v232
  %234 = vmatmul.bf16.gmra.mxu0 %v118
  %v235 = vpop.f32.mrf.mxu0
  %v236 = vadd.f32 0.0, %v235
  %v237 = vpop.f32.mrf.mxu0
  %v238 = vadd.f32 0.0, %v237
  %239 = vmatmul.bf16.gmra.mxu0 %v119
  %v240 = vpop.f32.mrf.mxu0
  %v241 = vadd.f32 0.0, %v240
  %v242 = vpop.f32.mrf.mxu0
  %v243 = vadd.f32 0.0, %v242
  %244 = vmatmul.bf16.gmra.mxu0 %v120
  %v245 = vpop.f32.mrf.mxu0
  %v246 = vadd.f32 0.0, %v245
  %v247 = vpop.f32.mrf.mxu0
  %v248 = vadd.f32 0.0, %v247
  %249 = vmatmul.bf16.gmra.mxu0 %v121
  %v250 = vpop.f32.mrf.mxu0
  %v251 = vadd.f32 0.0, %v250
  %v252 = vpop.f32.mrf.mxu0
  %v253 = vadd.f32 0.0, %v252
  %254 = vmatmul.bf16.gmra.mxu0 %v122
  %v255 = vpop.f32.mrf.mxu0
  %v256 = vadd.f32 0.0, %v255
  %v257 = vpop.f32.mrf.mxu0
  %v258 = vadd.f32 0.0, %v257
  %259 = vdwg.mxu0
  %260 = vmatpush.bf16.msra.mxu0 %v194
  %261 = vmatpush.bf16.msra.mxu0 %v192
  %262 = vmatpush.bf16.msra.mxu0 %v190
  %263 = vmatpush.bf16.msra.mxu0 %v188
  %264 = vmatpush.bf16.msra.mxu0 %v186
  %265 = vmatpush.bf16.msra.mxu0 %v184
  %266 = vmatpush.bf16.msra.mxu0 %v182
  %267 = vmatpush.bf16.msra.mxu0 %v180
  %268 = vmatmul.bf16.gmra.mxu0 %v115
  %v269 = vpop.f32.mrf.mxu0
  %v270 = vadd.f32 0.0, %v269
  %v271 = vpop.f32.mrf.mxu0
  %v272 = vadd.f32 0.0, %v271
  %273 = vmatmul.bf16.gmra.mxu0 %v116
  %v274 = vpop.f32.mrf.mxu0
  %v275 = vadd.f32 0.0, %v274
  %v276 = vpop.f32.mrf.mxu0
  %v277 = vadd.f32 0.0, %v276
  %278 = vmatmul.bf16.gmra.mxu0 %v117
  %v279 = vpop.f32.mrf.mxu0
  %v280 = vadd.f32 0.0, %v279
  %v281 = vpop.f32.mrf.mxu0
  %v282 = vadd.f32 0.0, %v281
  %283 = vmatmul.bf16.gmra.mxu0 %v118
  %v284 = vpop.f32.mrf.mxu0
  %v285 = vadd.f32 0.0, %v284
  %v286 = vpop.f32.mrf.mxu0
  %v287 = vadd.f32 0.0, %v286
  %288 = vmatmul.bf16.gmra.mxu0 %v119
  %v289 = vpop.f32.mrf.mxu0
  %v290 = vadd.f32 0.0, %v289
  %v291 = vpop.f32.mrf.mxu0
  %v292 = vadd.f32 0.0, %v291
  %293 = vmatmul.bf16.gmra.mxu0 %v120
  %v294 = vpop.f32.mrf.mxu0
  %v295 = vadd.f32 0.0, %v294
  %v296 = vpop.f32.mrf.mxu0
  %v297 = vadd.f32 0.0, %v296
  %298 = vmatmul.bf16.gmra.mxu0 %v121
  %v299 = vpop.f32.mrf.mxu0
  %v300 = vadd.f32 0.0, %v299
  %v301 = vpop.f32.mrf.mxu0
  %v302 = vadd.f32 0.0, %v301
  %303 = vmatmul.bf16.gmra.mxu0 %v122
  %v304 = vpop.f32.mrf.mxu0
  %v305 = vadd.f32 0.0, %v304
  %v306 = vpop.f32.mrf.mxu0
  %v307 = vadd.f32 0.0, %v306
  %308 = vdwg.mxu0
  %v309 = vpack.c.bf16 %v223, %v221
  %v310 = vpack.c.bf16 %v272, %v270
  %v311 = vpack.c.bf16 %v228, %v226
  %v312 = vpack.c.bf16 %v277, %v275
  %v313 = vpack.c.bf16 %v233, %v231
  %v314 = vpack.c.bf16 %v282, %v280
  %v315 = vpack.c.bf16 %v238, %v236
  %v316 = vpack.c.bf16 %v287, %v285
  %v317 = vpack.c.bf16 %v243, %v241
  %v318 = vpack.c.bf16 %v292, %v290
  %v319 = vpack.c.bf16 %v248, %v246
  %v320 = vpack.c.bf16 %v297, %v295
  %v321 = vpack.c.bf16 %v253, %v251
  %v322 = vpack.c.bf16 %v302, %v300
  %v323 = vpack.c.bf16 %v258, %v256
  %v324 = vpack.c.bf16 %v307, %v305
  %v325 = vld [vmem:[%s3] sm:$0x3]
  %v327 = vperm.slane %v325, 0
  %v328 = vperm.slane %v325, 1
  %v347 = vunpack.c.l.b16 %v35
  %v348 = vunpack.c.l.b16 %v36
  %v349 = vunpack.c.l.b16 %v37
  %v350 = vunpack.c.l.b16 %v38
  %v351 = vunpack.c.l.b16 %v39
  %v352 = vunpack.c.l.b16 %v40
  %v353 = vunpack.c.l.b16 %v41
  %v354 = vunpack.c.l.b16 %v42
  %v355 = vunpack.c.l.b16 %v43
  %v356 = vunpack.c.l.b16 %v44
  %v357 = vunpack.c.l.b16 %v45
  %v358 = vunpack.c.l.b16 %v46
  %v359 = vunpack.c.l.b16 %v47
  %v360 = vunpack.c.l.b16 %v48
  %v361 = vunpack.c.l.b16 %v49
  %v362 = vunpack.c.l.b16 %v50
  %v363 = vpack.c.b16 %v348, %v347
  %v364 = vpack.c.b16 %v350, %v349
  %v365 = vpack.c.b16 %v352, %v351
  %v366 = vpack.c.b16 %v354, %v353
  %v367 = vpack.c.b16 %v356, %v355
  %v368 = vpack.c.b16 %v358, %v357
  %v369 = vpack.c.b16 %v360, %v359
  %v370 = vpack.c.b16 %v362, %v361
  %379 = vmatpush.bf16.msra.mxu0 %v323
  %380 = vmatpush.bf16.msra.mxu0 %v321
  %381 = vmatpush.bf16.msra.mxu0 %v319
  %382 = vmatpush.bf16.msra.mxu0 %v317
  %383 = vmatpush.bf16.msra.mxu0 %v315
  %384 = vmatpush.bf16.msra.mxu0 %v313
  %385 = vmatpush.bf16.msra.mxu0 %v311
  %386 = vmatpush.bf16.msra.mxu0 %v309
  %387 = vmatmul.bf16.gmra.mxu0 %v363
  %v388 = vpop.f32.mrf.mxu0
  %v389 = vadd.f32 %v327, %v388
  %v390 = vpop.f32.mrf.mxu0
  %v391 = vadd.f32 %v327, %v390
  %392 = vmatmul.bf16.gmra.mxu0 %v364
  %v393 = vpop.f32.mrf.mxu0
  %v394 = vadd.f32 %v327, %v393
  %v395 = vpop.f32.mrf.mxu0
  %v396 = vadd.f32 %v327, %v395
  %397 = vmatmul.bf16.gmra.mxu0 %v365
  %v398 = vpop.f32.mrf.mxu0
  %v399 = vadd.f32 %v327, %v398
  %v400 = vpop.f32.mrf.mxu0
  %v401 = vadd.f32 %v327, %v400
  %402 = vmatmul.bf16.gmra.mxu0 %v366
  %v403 = vpop.f32.mrf.mxu0
  %v404 = vadd.f32 %v327, %v403
  %v405 = vpop.f32.mrf.mxu0
  %v406 = vadd.f32 %v327, %v405
  %407 = vmatmul.bf16.gmra.mxu0 %v367
  %v408 = vpop.f32.mrf.mxu0
  %v409 = vadd.f32 %v327, %v408
  %v410 = vpop.f32.mrf.mxu0
  %v411 = vadd.f32 %v327, %v410
  %412 = vmatmul.bf16.gmra.mxu0 %v368
  %v413 = vpop.f32.mrf.mxu0
  %v414 = vadd.f32 %v327, %v413
  %v415 = vpop.f32.mrf.mxu0
  %v416 = vadd.f32 %v327, %v415
  %417 = vmatmul.bf16.gmra.mxu0 %v369
  %v418 = vpop.f32.mrf.mxu0
  %v419 = vadd.f32 %v327, %v418
  %v420 = vpop.f32.mrf.mxu0
  %v421 = vadd.f32 %v327, %v420
  %422 = vmatmul.bf16.gmra.mxu0 %v370
  %v423 = vpop.f32.mrf.mxu0
  %v424 = vadd.f32 %v327, %v423
  %v425 = vpop.f32.mrf.mxu0
  %v426 = vadd.f32 %v327, %v425
  %427 = vdwg.mxu0
  %428 = vmatpush.bf16.msra.mxu0 %v324
  %429 = vmatpush.bf16.msra.mxu0 %v322
  %430 = vmatpush.bf16.msra.mxu0 %v320
  %431 = vmatpush.bf16.msra.mxu0 %v318
  %432 = vmatpush.bf16.msra.mxu0 %v316
  %433 = vmatpush.bf16.msra.mxu0 %v314
  %434 = vmatpush.bf16.msra.mxu0 %v312
  %435 = vmatpush.bf16.msra.mxu0 %v310
  %436 = vmatmul.bf16.gmra.mxu0 %v363
  %v437 = vpop.f32.mrf.mxu0
  %v438 = vadd.f32 %v328, %v437
  %v439 = vpop.f32.mrf.mxu0
  %v440 = vadd.f32 %v328, %v439
  %441 = vmatmul.bf16.gmra.mxu0 %v364
  %v442 = vpop.f32.mrf.mxu0
  %v443 = vadd.f32 %v328, %v442
  %v444 = vpop.f32.mrf.mxu0
  %v445 = vadd.f32 %v328, %v444
  %446 = vmatmul.bf16.gmra.mxu0 %v365
  %v447 = vpop.f32.mrf.mxu0
  %v448 = vadd.f32 %v328, %v447
  %v449 = vpop.f32.mrf.mxu0
  %v450 = vadd.f32 %v328, %v449
  %451 = vmatmul.bf16.gmra.mxu0 %v366
  %v452 = vpop.f32.mrf.mxu0
  %v453 = vadd.f32 %v328, %v452
  %v454 = vpop.f32.mrf.mxu0
  %v455 = vadd.f32 %v328, %v454
  %456 = vmatmul.bf16.gmra.mxu0 %v367
  %v457 = vpop.f32.mrf.mxu0
  %v458 = vadd.f32 %v328, %v457
  %v459 = vpop.f32.mrf.mxu0
  %v460 = vadd.f32 %v328, %v459
  %461 = vmatmul.bf16.gmra.mxu0 %v368
  %v462 = vpop.f32.mrf.mxu0
  %v463 = vadd.f32 %v328, %v462
  %v464 = vpop.f32.mrf.mxu0
  %v465 = vadd.f32 %v328, %v464
  %466 = vmatmul.bf16.gmra.mxu0 %v369
  %v467 = vpop.f32.mrf.mxu0
  %v468 = vadd.f32 %v328, %v467
  %v469 = vpop.f32.mrf.mxu0
  %v470 = vadd.f32 %v328, %v469
  %471 = vmatmul.bf16.gmra.mxu0 %v370
  %v472 = vpop.f32.mrf.mxu0
  %v473 = vadd.f32 %v328, %v472
  %v474 = vpop.f32.mrf.mxu0
  %v475 = vadd.f32 %v328, %v474
  %476 = vdwg.mxu0
  %v477 = vmax.f32 %v389, 0.0
  %v478 = vmax.f32 %v438, 0.0
  %v479 = vmax.f32 %v391, 0.0
  %v480 = vmax.f32 %v440, 0.0
  %v481 = vmax.f32 %v394, 0.0
  %v482 = vmax.f32 %v443, 0.0
  %v483 = vmax.f32 %v396, 0.0
  %v484 = vmax.f32 %v445, 0.0
  %v485 = vmax.f32 %v399, 0.0
  %v486 = vmax.f32 %v448, 0.0
  %v487 = vmax.f32 %v401, 0.0
  %v488 = vmax.f32 %v450, 0.0
  %v489 = vmax.f32 %v404, 0.0
  %v490 = vmax.f32 %v453, 0.0
  %v491 = vmax.f32 %v406, 0.0
  %v492 = vmax.f32 %v455, 0.0
  %v493 = vmax.f32 %v409, 0.0
  %v494 = vmax.f32 %v458, 0.0
  %v495 = vmax.f32 %v411, 0.0
  %v496 = vmax.f32 %v460, 0.0
  %v497 = vmax.f32 %v414, 0.0
  %v498 = vmax.f32 %v463, 0.0
  %v499 = vmax.f32 %v416, 0.0
  %v500 = vmax.f32 %v465, 0.0
  %v501 = vmax.f32 %v419, 0.0
  %v502 = vmax.f32 %v468, 0.0
  %v503 = vmax.f32 %v421, 0.0
  %v504 = vmax.f32 %v470, 0.0
  %v505 = vmax.f32 %v424, 0.0
  %v506 = vmax.f32 %v473, 0.0
  %v507 = vmax.f32 %v426, 0.0
  %v508 = vmax.f32 %v475, 0.0
  %v509 = vpack.c.bf16 %v479, %v477
  %v510 = vpack.c.bf16 %v480, %v478
  %v511 = vpack.c.bf16 %v483, %v481
  %v512 = vpack.c.bf16 %v484, %v482
  %v513 = vpack.c.bf16 %v487, %v485
  %v514 = vpack.c.bf16 %v488, %v486
  %v515 = vpack.c.bf16 %v491, %v489
  %v516 = vpack.c.bf16 %v492, %v490
  %v517 = vpack.c.bf16 %v495, %v493
  %v518 = vpack.c.bf16 %v496, %v494
  %v519 = vpack.c.bf16 %v499, %v497
  %v520 = vpack.c.bf16 %v500, %v498
  %v521 = vpack.c.bf16 %v503, %v501
  %v522 = vpack.c.bf16 %v504, %v502
  %v523 = vpack.c.bf16 %v507, %v505
  %v524 = vpack.c.bf16 %v508, %v506
  %v525 = vld [vmem:[%s4] sm:$0xff]
  %v526 = vld [vmem:[%s4 + $0x8] sm:$0xff]
  %v527 = vld [vmem:[%s4 + $0x10] sm:$0xff]
  %v528 = vld [vmem:[%s4 + $0x18] sm:$0xff]
  %v529 = vld [vmem:[%s4 + $0x20] sm:$0xff]
  %v530 = vld [vmem:[%s4 + $0x28] sm:$0xff]
  %v531 = vld [vmem:[%s4 + $0x30] sm:$0xff]
  %v532 = vld [vmem:[%s4 + $0x38] sm:$0xff]
  %v533 = vld [vmem:[%s4 + $0x40] sm:$0xff]
  %v534 = vld [vmem:[%s4 + $0x48] sm:$0xff]
  %v535 = vld [vmem:[%s4 + $0x50] sm:$0xff]
  %v536 = vld [vmem:[%s4 + $0x58] sm:$0xff]
  %v537 = vld [vmem:[%s4 + $0x60] sm:$0xff]
  %v538 = vld [vmem:[%s4 + $0x68] sm:$0xff]
  %v539 = vld [vmem:[%s4 + $0x70] sm:$0xff]
  %v540 = vld [vmem:[%s4 + $0x78] sm:$0xff]
  %v541 = vld [vmem:[%s4 + $0x80] sm:$0xff]
  %v542 = vld [vmem:[%s4 + $0x88] sm:$0xff]
  %v543 = vld [vmem:[%s4 + $0x90] sm:$0xff]
  %v544 = vld [vmem:[%s4 + $0x98] sm:$0xff]
  %v545 = vld [vmem:[%s4 + $0xa0] sm:$0xff]
  %v546 = vld [vmem:[%s4 + $0xa8] sm:$0xff]
  %v547 = vld [vmem:[%s4 + $0xb0] sm:$0xff]
  %v548 = vld [vmem:[%s4 + $0xb8] sm:$0xff]
  %v549 = vld [vmem:[%s4 + $0xc0] sm:$0xff]
  %v550 = vld [vmem:[%s4 + $0xc8] sm:$0xff]
  %v551 = vld [vmem:[%s4 + $0xd0] sm:$0xff]
  %v552 = vld [vmem:[%s4 + $0xd8] sm:$0xff]
  %v553 = vld [vmem:[%s4 + $0xe0] sm:$0xff]
  %v554 = vld [vmem:[%s4 + $0xe8] sm:$0xff]
  %v555 = vld [vmem:[%s4 + $0xf0] sm:$0xff]
  %v556 = vld [vmem:[%s4 + $0xf8] sm:$0xff]
  %v589 = vunpack.c.l.b16 %v525
  %v590 = vunpack.c.h.b16 %v525
  %v591 = vunpack.c.l.b16 %v526
  %v592 = vunpack.c.h.b16 %v526
  %v593 = vunpack.c.l.b16 %v527
  %v594 = vunpack.c.h.b16 %v527
  %v595 = vunpack.c.l.b16 %v528
  %v596 = vunpack.c.h.b16 %v528
  %v597 = vunpack.c.l.b16 %v529
  %v598 = vunpack.c.h.b16 %v529
  %v599 = vunpack.c.l.b16 %v530
  %v600 = vunpack.c.h.b16 %v530
  %v601 = vunpack.c.l.b16 %v531
  %v602 = vunpack.c.h.b16 %v531
  %v603 = vunpack.c.l.b16 %v532
  %v604 = vunpack.c.h.b16 %v532
  %v605 = vunpack.c.l.b16 %v533
  %v606 = vunpack.c.h.b16 %v533
  %v607 = vunpack.c.l.b16 %v534
  %v608 = vunpack.c.h.b16 %v534
  %v609 = vunpack.c.l.b16 %v535
  %v610 = vunpack.c.h.b16 %v535
  %v611 = vunpack.c.l.b16 %v536
  %v612 = vunpack.c.h.b16 %v536
  %v613 = vunpack.c.l.b16 %v537
  %v614 = vunpack.c.h.b16 %v537
  %v615 = vunpack.c.l.b16 %v538
  %v616 = vunpack.c.h.b16 %v538
  %v617 = vunpack.c.l.b16 %v539
  %v618 = vunpack.c.h.b16 %v539
  %v619 = vunpack.c.l.b16 %v540
  %v620 = vunpack.c.h.b16 %v540
  %v621 = vunpack.c.l.b16 %v541
  %v622 = vunpack.c.h.b16 %v541
  %v623 = vunpack.c.l.b16 %v542
  %v624 = vunpack.c.h.b16 %v542
  %v625 = vunpack.c.l.b16 %v543
  %v626 = vunpack.c.h.b16 %v543
  %v627 = vunpack.c.l.b16 %v544
  %v628 = vunpack.c.h.b16 %v544
  %v629 = vunpack.c.l.b16 %v545
  %v630 = vunpack.c.h.b16 %v545
  %v631 = vunpack.c.l.b16 %v546
  %v632 = vunpack.c.h.b16 %v546
  %v633 = vunpack.c.l.b16 %v547
  %v634 = vunpack.c.h.b16 %v547
  %v635 = vunpack.c.l.b16 %v548
  %v636 = vunpack.c.h.b16 %v548
  %v637 = vunpack.c.l.b16 %v549
  %v638 = vunpack.c.h.b16 %v549
  %v639 = vunpack.c.l.b16 %v550
  %v640 = vunpack.c.h.b16 %v550
  %v641 = vunpack.c.l.b16 %v551
  %v642 = vunpack.c.h.b16 %v551
  %v643 = vunpack.c.l.b16 %v552
  %v644 = vunpack.c.h.b16 %v552
  %v645 = vunpack.c.l.b16 %v553
  %v646 = vunpack.c.h.b16 %v553
  %v647 = vunpack.c.l.b16 %v554
  %v648 = vunpack.c.h.b16 %v554
  %v649 = vunpack.c.l.b16 %v555
  %v650 = vunpack.c.h.b16 %v555
  %v651 = vunpack.c.l.b16 %v556
  %v652 = vunpack.c.h.b16 %v556
  %v653 = vpack.c.b16 %v591, %v589
  %v654 = vpack.c.b16 %v592, %v590
  %v655 = vpack.c.b16 %v595, %v593
  %v656 = vpack.c.b16 %v596, %v594
  %v657 = vpack.c.b16 %v599, %v597
  %v658 = vpack.c.b16 %v600, %v598
  %v659 = vpack.c.b16 %v603, %v601
  %v660 = vpack.c.b16 %v604, %v602
  %v661 = vpack.c.b16 %v607, %v605
  %v662 = vpack.c.b16 %v608, %v606
  %v663 = vpack.c.b16 %v611, %v609
  %v664 = vpack.c.b16 %v612, %v610
  %v665 = vpack.c.b16 %v615, %v613
  %v666 = vpack.c.b16 %v616, %v614
  %v667 = vpack.c.b16 %v619, %v617
  %v668 = vpack.c.b16 %v620, %v618
  %v669 = vpack.c.b16 %v623, %v621
  %v670 = vpack.c.b16 %v624, %v622
  %v671 = vpack.c.b16 %v627, %v625
  %v672 = vpack.c.b16 %v628, %v626
  %v673 = vpack.c.b16 %v631, %v629
  %v674 = vpack.c.b16 %v632, %v630
  %v675 = vpack.c.b16 %v635, %v633
  %v676 = vpack.c.b16 %v636, %v634
  %v677 = vpack.c.b16 %v639, %v637
  %v678 = vpack.c.b16 %v640, %v638
  %v679 = vpack.c.b16 %v643, %v641
  %v680 = vpack.c.b16 %v644, %v642
  %v681 = vpack.c.b16 %v647, %v645
  %v682 = vpack.c.b16 %v648, %v646
  %v683 = vpack.c.b16 %v651, %v649
  %v684 = vpack.c.b16 %v652, %v650
  %717 = vmatpush.bf16.msra.mxu0 %v667
  %718 = vmatpush.bf16.msra.mxu0 %v665
  %719 = vmatpush.bf16.msra.mxu0 %v663
  %720 = vmatpush.bf16.msra.mxu0 %v661
  %721 = vmatpush.bf16.msra.mxu0 %v659
  %722 = vmatpush.bf16.msra.mxu0 %v657
  %723 = vmatpush.bf16.msra.mxu0 %v655
  %724 = vmatpush.bf16.msra.mxu0 %v653
  %725 = vmatmul.bf16.gmra.mxu0 %v509
  %v726 = vpop.f32.mrf.mxu0
  %v727 = vadd.f32 0.0, %v726
  %v728 = vpop.f32.mrf.mxu0
  %v729 = vadd.f32 0.0, %v728
  %730 = vmatmul.bf16.gmra.mxu0 %v511
  %v731 = vpop.f32.mrf.mxu0
  %v732 = vadd.f32 0.0, %v731
  %v733 = vpop.f32.mrf.mxu0
  %v734 = vadd.f32 0.0, %v733
  %735 = vmatmul.bf16.gmra.mxu0 %v513
  %v736 = vpop.f32.mrf.mxu0
  %v737 = vadd.f32 0.0, %v736
  %v738 = vpop.f32.mrf.mxu0
  %v739 = vadd.f32 0.0, %v738
  %740 = vmatmul.bf16.gmra.mxu0 %v515
  %v741 = vpop.f32.mrf.mxu0
  %v742 = vadd.f32 0.0, %v741
  %v743 = vpop.f32.mrf.mxu0
  %v744 = vadd.f32 0.0, %v743
  %745 = vmatmul.bf16.gmra.mxu0 %v517
  %v746 = vpop.f32.mrf.mxu0
  %v747 = vadd.f32 0.0, %v746
  %v748 = vpop.f32.mrf.mxu0
  %v749 = vadd.f32 0.0, %v748
  %750 = vmatmul.bf16.gmra.mxu0 %v519
  %v751 = vpop.f32.mrf.mxu0
  %v752 = vadd.f32 0.0, %v751
  %v753 = vpop.f32.mrf.mxu0
  %v754 = vadd.f32 0.0, %v753
  %755 = vmatmul.bf16.gmra.mxu0 %v521
  %v756 = vpop.f32.mrf.mxu0
  %v757 = vadd.f32 0.0, %v756
  %v758 = vpop.f32.mrf.mxu0
  %v759 = vadd.f32 0.0, %v758
  %760 = vmatmul.bf16.gmra.mxu0 %v523
  %v761 = vpop.f32.mrf.mxu0
  %v762 = vadd.f32 0.0, %v761
  %v763 = vpop.f32.mrf.mxu0
  %v764 = vadd.f32 0.0, %v763
  %765 = vdwg.mxu0
  %766 = vmatpush.bf16.msra.mxu0 %v683
  %767 = vmatpush.bf16.msra.mxu0 %v681
  %768 = vmatpush.bf16.msra.mxu0 %v679
  %769 = vmatpush.bf16.msra.mxu0 %v677
  %770 = vmatpush.bf16.msra.mxu0 %v675
  %771 = vmatpush.bf16.msra.mxu0 %v673
  %772 = vmatpush.bf16.msra.mxu0 %v671
  %773 = vmatpush.bf16.msra.mxu0 %v669
  %774 = vmatmul.bf16.gmra.mxu0 %v510
  %v775 = vpop.f32.mrf.mxu0
  %v776 = vadd.f32 %v727, %v775
  %v777 = vpop.f32.mrf.mxu0
  %v778 = vadd.f32 %v729, %v777
  %779 = vmatmul.bf16.gmra.mxu0 %v512
  %v780 = vpop.f32.mrf.mxu0
  %v781 = vadd.f32 %v732, %v780
  %v782 = vpop.f32.mrf.mxu0
  %v783 = vadd.f32 %v734, %v782
  %784 = vmatmul.bf16.gmra.mxu0 %v514
  %v785 = vpop.f32.mrf.mxu0
  %v786 = vadd.f32 %v737, %v785
  %v787 = vpop.f32.mrf.mxu0
  %v788 = vadd.f32 %v739, %v787
  %789 = vmatmul.bf16.gmra.mxu0 %v516
  %v790 = vpop.f32.mrf.mxu0
  %v791 = vadd.f32 %v742, %v790
  %v792 = vpop.f32.mrf.mxu0
  %v793 = vadd.f32 %v744, %v792
  %794 = vmatmul.bf16.gmra.mxu0 %v518
  %v795 = vpop.f32.mrf.mxu0
  %v796 = vadd.f32 %v747, %v795
  %v797 = vpop.f32.mrf.mxu0
  %v798 = vadd.f32 %v749, %v797
  %799 = vmatmul.bf16.gmra.mxu0 %v520
  %v800 = vpop.f32.mrf.mxu0
  %v801 = vadd.f32 %v752, %v800
  %v802 = vpop.f32.mrf.mxu0
  %v803 = vadd.f32 %v754, %v802
  %804 = vmatmul.bf16.gmra.mxu0 %v522
  %v805 = vpop.f32.mrf.mxu0
  %v806 = vadd.f32 %v757, %v805
  %v807 = vpop.f32.mrf.mxu0
  %v808 = vadd.f32 %v759, %v807
  %809 = vmatmul.bf16.gmra.mxu0 %v524
  %v810 = vpop.f32.mrf.mxu0
  %v811 = vadd.f32 %v762, %v810
  %v812 = vpop.f32.mrf.mxu0
  %v813 = vadd.f32 %v764, %v812
  %814 = vdwg.mxu0
  %815 = vmatpush.bf16.msra.mxu0 %v668
  %816 = vmatpush.bf16.msra.mxu0 %v666
  %817 = vmatpush.bf16.msra.mxu0 %v664
  %818 = vmatpush.bf16.msra.mxu0 %v662
  %819 = vmatpush.bf16.msra.mxu0 %v660
  %820 = vmatpush.bf16.msra.mxu0 %v658
  %821 = vmatpush.bf16.msra.mxu0 %v656
  %822 = vmatpush.bf16.msra.mxu0 %v654
  %823 = vmatmul.bf16.gmra.mxu0 %v509
  %v824 = vpop.f32.mrf.mxu0
  %v825 = vadd.f32 0.0, %v824
  %v826 = vpop.f32.mrf.mxu0
  %v827 = vadd.f32 0.0, %v826
  %828 = vmatmul.bf16.gmra.mxu0 %v511
  %v829 = vpop.f32.mrf.mxu0
  %v830 = vadd.f32 0.0, %v829
  %v831 = vpop.f32.mrf.mxu0
  %v832 = vadd.f32 0.0, %v831
  %833 = vmatmul.bf16.gmra.mxu0 %v513
  %v834 = vpop.f32.mrf.mxu0
  %v835 = vadd.f32 0.0, %v834
  %v836 = vpop.f32.mrf.mxu0
  %v837 = vadd.f32 0.0, %v836
  %838 = vmatmul.bf16.gmra.mxu0 %v515
  %v839 = vpop.f32.mrf.mxu0
  %v840 = vadd.f32 0.0, %v839
  %v841 = vpop.f32.mrf.mxu0
  %v842 = vadd.f32 0.0, %v841
  %843 = vmatmul.bf16.gmra.mxu0 %v517
  %v844 = vpop.f32.mrf.mxu0
  %v845 = vadd.f32 0.0, %v844
  %v846 = vpop.f32.mrf.mxu0
  %v847 = vadd.f32 0.0, %v846
  %848 = vmatmul.bf16.gmra.mxu0 %v519
  %v849 = vpop.f32.mrf.mxu0
  %v850 = vadd.f32 0.0, %v849
  %v851 = vpop.f32.mrf.mxu0
  %v852 = vadd.f32 0.0, %v851
  %853 = vmatmul.bf16.gmra.mxu0 %v521
  %v854 = vpop.f32.mrf.mxu0
  %v855 = vadd.f32 0.0, %v854
  %v856 = vpop.f32.mrf.mxu0
  %v857 = vadd.f32 0.0, %v856
  %858 = vmatmul.bf16.gmra.mxu0 %v523
  %v859 = vpop.f32.mrf.mxu0
  %v860 = vadd.f32 0.0, %v859
  %v861 = vpop.f32.mrf.mxu0
  %v862 = vadd.f32 0.0, %v861
  %863 = vdwg.mxu0
  %864 = vmatpush.bf16.msra.mxu0 %v684
  %865 = vmatpush.bf16.msra.mxu0 %v682
  %866 = vmatpush.bf16.msra.mxu0 %v680
  %867 = vmatpush.bf16.msra.mxu0 %v678
  %868 = vmatpush.bf16.msra.mxu0 %v676
  %869 = vmatpush.bf16.msra.mxu0 %v674
  %870 = vmatpush.bf16.msra.mxu0 %v672
  %871 = vmatpush.bf16.msra.mxu0 %v670
  %872 = vmatmul.bf16.gmra.mxu0 %v510
  %v873 = vpop.f32.mrf.mxu0
  %v874 = vadd.f32 %v825, %v873
  %v875 = vpop.f32.mrf.mxu0
  %v876 = vadd.f32 %v827, %v875
  %877 = vmatmul.bf16.gmra.mxu0 %v512
  %v878 = vpop.f32.mrf.mxu0
  %v879 = vadd.f32 %v830, %v878
  %v880 = vpop.f32.mrf.mxu0
  %v881 = vadd.f32 %v832, %v880
  %882 = vmatmul.bf16.gmra.mxu0 %v514
  %v883 = vpop.f32.mrf.mxu0
  %v884 = vadd.f32 %v835, %v883
  %v885 = vpop.f32.mrf.mxu0
  %v886 = vadd.f32 %v837, %v885
  %887 = vmatmul.bf16.gmra.mxu0 %v516
  %v888 = vpop.f32.mrf.mxu0
  %v889 = vadd.f32 %v840, %v888
  %v890 = vpop.f32.mrf.mxu0
  %v891 = vadd.f32 %v842, %v890
  %892 = vmatmul.bf16.gmra.mxu0 %v518
  %v893 = vpop.f32.mrf.mxu0
  %v894 = vadd.f32 %v845, %v893
  %v895 = vpop.f32.mrf.mxu0
  %v896 = vadd.f32 %v847, %v895
  %897 = vmatmul.bf16.gmra.mxu0 %v520
  %v898 = vpop.f32.mrf.mxu0
  %v899 = vadd.f32 %v850, %v898
  %v900 = vpop.f32.mrf.mxu0
  %v901 = vadd.f32 %v852, %v900
  %902 = vmatmul.bf16.gmra.mxu0 %v522
  %v903 = vpop.f32.mrf.mxu0
  %v904 = vadd.f32 %v855, %v903
  %v905 = vpop.f32.mrf.mxu0
  %v906 = vadd.f32 %v857, %v905
  %907 = vmatmul.bf16.gmra.mxu0 %v524
  %v908 = vpop.f32.mrf.mxu0
  %v909 = vadd.f32 %v860, %v908
  %v910 = vpop.f32.mrf.mxu0
  %v911 = vadd.f32 %v862, %v910
  %912 = vdwg.mxu0
  %v913 = vpack.c.bf16 %v778, %v776
  %v914 = vpack.c.bf16 %v876, %v874
  %v915 = vpack.c.bf16 %v783, %v781
  %v916 = vpack.c.bf16 %v881, %v879
  %v917 = vpack.c.bf16 %v788, %v786
  %v918 = vpack.c.bf16 %v886, %v884
  %v919 = vpack.c.bf16 %v793, %v791
  %v920 = vpack.c.bf16 %v891, %v889
  %v921 = vpack.c.bf16 %v798, %v796
  %v922 = vpack.c.bf16 %v896, %v894
  %v923 = vpack.c.bf16 %v803, %v801
  %v924 = vpack.c.bf16 %v901, %v899
  %v925 = vpack.c.bf16 %v808, %v806
  %v926 = vpack.c.bf16 %v906, %v904
  %v927 = vpack.c.bf16 %v813, %v811
  %v928 = vpack.c.bf16 %v911, %v909
  %v929 = vld [vmem:[%s5] sm:$0x3]
  %v931 = vperm.slane %v929, 0
  %v932 = vperm.slane %v929, 1
  %935 = vmatpush.bf16.msra.mxu0 %v927
  %936 = vmatpush.bf16.msra.mxu0 %v925
  %937 = vmatpush.bf16.msra.mxu0 %v923
  %938 = vmatpush.bf16.msra.mxu0 %v921
  %939 = vmatpush.bf16.msra.mxu0 %v919
  %940 = vmatpush.bf16.msra.mxu0 %v917
  %941 = vmatpush.bf16.msra.mxu0 %v915
  %942 = vmatpush.bf16.msra.mxu0 %v913
  %943 = vmatmul.bf16.gmra.mxu0 %v363
  %v944 = vpop.f32.mrf.mxu0
  %v945 = vadd.f32 %v931, %v944
  %v946 = vpop.f32.mrf.mxu0
  %v947 = vadd.f32 %v931, %v946
  %948 = vmatmul.bf16.gmra.mxu0 %v364
  %v949 = vpop.f32.mrf.mxu0
  %v950 = vadd.f32 %v931, %v949
  %v951 = vpop.f32.mrf.mxu0
  %v952 = vadd.f32 %v931, %v951
  %953 = vmatmul.bf16.gmra.mxu0 %v365
  %v954 = vpop.f32.mrf.mxu0
  %v955 = vadd.f32 %v931, %v954
  %v956 = vpop.f32.mrf.mxu0
  %v957 = vadd.f32 %v931, %v956
  %958 = vmatmul.bf16.gmra.mxu0 %v366
  %v959 = vpop.f32.mrf.mxu0
  %v960 = vadd.f32 %v931, %v959
  %v961 = vpop.f32.mrf.mxu0
  %v962 = vadd.f32 %v931, %v961
  %963 = vmatmul.bf16.gmra.mxu0 %v367
  %v964 = vpop.f32.mrf.mxu0
  %v965 = vadd.f32 %v931, %v964
  %v966 = vpop.f32.mrf.mxu0
  %v967 = vadd.f32 %v931, %v966
  %968 = vmatmul.bf16.gmra.mxu0 %v368
  %v969 = vpop.f32.mrf.mxu0
  %v970 = vadd.f32 %v931, %v969
  %v971 = vpop.f32.mrf.mxu0
  %v972 = vadd.f32 %v931, %v971
  %973 = vmatmul.bf16.gmra.mxu0 %v369
  %v974 = vpop.f32.mrf.mxu0
  %v975 = vadd.f32 %v931, %v974
  %v976 = vpop.f32.mrf.mxu0
  %v977 = vadd.f32 %v931, %v976
  %978 = vmatmul.bf16.gmra.mxu0 %v370
  %v979 = vpop.f32.mrf.mxu0
  %v980 = vadd.f32 %v931, %v979
  %v981 = vpop.f32.mrf.mxu0
  %v982 = vadd.f32 %v931, %v981
  %983 = vdwg.mxu0
  %984 = vmatpush.bf16.msra.mxu0 %v928
  %985 = vmatpush.bf16.msra.mxu0 %v926
  %986 = vmatpush.bf16.msra.mxu0 %v924
  %987 = vmatpush.bf16.msra.mxu0 %v922
  %988 = vmatpush.bf16.msra.mxu0 %v920
  %989 = vmatpush.bf16.msra.mxu0 %v918
  %990 = vmatpush.bf16.msra.mxu0 %v916
  %991 = vmatpush.bf16.msra.mxu0 %v914
  %992 = vmatmul.bf16.gmra.mxu0 %v363
  %v993 = vpop.f32.mrf.mxu0
  %v994 = vadd.f32 %v932, %v993
  %v995 = vpop.f32.mrf.mxu0
  %v996 = vadd.f32 %v932, %v995
  %997 = vmatmul.bf16.gmra.mxu0 %v364
  %v998 = vpop.f32.mrf.mxu0
  %v999 = vadd.f32 %v932, %v998
  %v1000 = vpop.f32.mrf.mxu0
  %v1001 = vadd.f32 %v932, %v1000
  %1002 = vmatmul.bf16.gmra.mxu0 %v365
  %v1003 = vpop.f32.mrf.mxu0
  %v1004 = vadd.f32 %v932, %v1003
  %v1005 = vpop.f32.mrf.mxu0
  %v1006 = vadd.f32 %v932, %v1005
  %1007 = vmatmul.bf16.gmra.mxu0 %v366
  %v1008 = vpop.f32.mrf.mxu0
  %v1009 = vadd.f32 %v932, %v1008
  %v1010 = vpop.f32.mrf.mxu0
  %v1011 = vadd.f32 %v932, %v1010
  %1012 = vmatmul.bf16.gmra.mxu0 %v367
  %v1013 = vpop.f32.mrf.mxu0
  %v1014 = vadd.f32 %v932, %v1013
  %v1015 = vpop.f32.mrf.mxu0
  %v1016 = vadd.f32 %v932, %v1015
  %1017 = vmatmul.bf16.gmra.mxu0 %v368
  %v1018 = vpop.f32.mrf.mxu0
  %v1019 = vadd.f32 %v932, %v1018
  %v1020 = vpop.f32.mrf.mxu0
  %v1021 = vadd.f32 %v932, %v1020
  %1022 = vmatmul.bf16.gmra.mxu0 %v369
  %v1023 = vpop.f32.mrf.mxu0
  %v1024 = vadd.f32 %v932, %v1023
  %v1025 = vpop.f32.mrf.mxu0
  %v1026 = vadd.f32 %v932, %v1025
  %1027 = vmatmul.bf16.gmra.mxu0 %v370
  %v1028 = vpop.f32.mrf.mxu0
  %v1029 = vadd.f32 %v932, %v1028
  %v1030 = vpop.f32.mrf.mxu0
  %v1031 = vadd.f32 %v932, %v1030
  %1032 = vdwg.mxu0
  %1033 = vst [vmem:[%s10] sm:$0xff] %v945
  %1034 = vst [vmem:[%s10 + $0x8] sm:$0xff] %v994
  %1035 = vst [vmem:[%s10 + $0x18] sm:$0xff] %v947
  %1036 = vst [vmem:[%s10 + $0x20] sm:$0xff] %v996
  %1037 = vst [vmem:[%s10 + $0x30] sm:$0xff] %v950
  %1038 = vst [vmem:[%s10 + $0x38] sm:$0xff] %v999
  %1039 = vst [vmem:[%s10 + $0x48] sm:$0xff] %v952
  %1040 = vst [vmem:[%s10 + $0x50] sm:$0xff] %v1001
  %1041 = vst [vmem:[%s10 + $0x60] sm:$0xff] %v955
  %1042 = vst [vmem:[%s10 + $0x68] sm:$0xff] %v1004
  %1043 = vst [vmem:[%s10 + $0x78] sm:$0xff] %v957
  %1044 = vst [vmem:[%s10 + $0x80] sm:$0xff] %v1006
  %1045 = vst [vmem:[%s10 + $0x90] sm:$0xff] %v960
  %1046 = vst [vmem:[%s10 + $0x98] sm:$0xff] %v1009
  %1047 = vst [vmem:[%s10 + $0xa8] sm:$0xff] %v962
  %1048 = vst [vmem:[%s10 + $0xb0] sm:$0xff] %v1011
  %1049 = vst [vmem:[%s10 + $0xc0] sm:$0xff] %v965
  %1050 = vst [vmem:[%s10 + $0xc8] sm:$0xff] %v1014
  %1051 = vst [vmem:[%s10 + $0xd8] sm:$0xff] %v967
  %1052 = vst [vmem:[%s10 + $0xe0] sm:$0xff] %v1016
  %1053 = vst [vmem:[%s10 + $0xf0] sm:$0xff] %v970
  %1054 = vst [vmem:[%s10 + $0xf8] sm:$0xff] %v1019
  %1055 = vst [vmem:[%s10 + $0x108] sm:$0xff] %v972
  %1056 = vst [vmem:[%s10 + $0x110] sm:$0xff] %v1021
  %1057 = vst [vmem:[%s10 + $0x120] sm:$0xff] %v975
  %1058 = vst [vmem:[%s10 + $0x128] sm:$0xff] %v1024
  %1059 = vst [vmem:[%s10 + $0x138] sm:$0xff] %v977
  %1060 = vst [vmem:[%s10 + $0x140] sm:$0xff] %v1026
  %1061 = vst [vmem:[%s10 + $0x150] sm:$0xff] %v980
  %1062 = vst [vmem:[%s10 + $0x158] sm:$0xff] %v1029
  %1063 = vst [vmem:[%s10 + $0x168] sm:$0xff] %v982
  %1064 = vst [vmem:[%s10 + $0x170] sm:$0xff] %v1031
  %v1065 = vpack.c.bf16 %v947, %v945
  %v1066 = vpack.c.bf16 %v952, %v950
  %v1067 = vpack.c.bf16 %v957, %v955
  %v1068 = vpack.c.bf16 %v962, %v960
  %v1069 = vpack.c.bf16 %v967, %v965
  %v1070 = vpack.c.bf16 %v972, %v970
  %v1071 = vpack.c.bf16 %v977, %v975
  %v1072 = vpack.c.bf16 %v982, %v980
  %v1073 = vld [vmem:[%s6] sm:$0xf]
  %v1074 = vld [vmem:[%s6 + $0x4] sm:$0xf]
  %v1075 = vld [vmem:[%s6 + $0x8] sm:$0xf]
  %v1076 = vld [vmem:[%s6 + $0xc] sm:$0xf]
  %v1077 = vld [vmem:[%s6 + $0x10] sm:$0xf]
  %v1078 = vld [vmem:[%s6 + $0x14] sm:$0xf]
  %v1079 = vld [vmem:[%s6 + $0x18] sm:$0xf]
  %v1080 = vld [vmem:[%s6 + $0x1c] sm:$0xf]
  %v1081 = vld [vmem:[%s6 + $0x20] sm:$0xf]
  %v1082 = vld [vmem:[%s6 + $0x24] sm:$0xf]
  %v1083 = vld [vmem:[%s6 + $0x28] sm:$0xf]
  %v1084 = vld [vmem:[%s6 + $0x2c] sm:$0xf]
  %v1085 = vld [vmem:[%s6 + $0x30] sm:$0xf]
  %v1086 = vld [vmem:[%s6 + $0x34] sm:$0xf]
  %v1087 = vld [vmem:[%s6 + $0x38] sm:$0xf]
  %v1088 = vld [vmem:[%s6 + $0x3c] sm:$0xf]
  %v1089 = vld [vmem:[%s7] sm:$0x1]
  %v1091 = vperm.slane %v1089, 0
  %v1109 = vunpack.c.l.b16 %v1073
  %v1110 = vunpack.c.l.b16 %v1074
  %v1111 = vunpack.c.l.b16 %v1075
  %v1112 = vunpack.c.l.b16 %v1076
  %v1113 = vunpack.c.l.b16 %v1077
  %v1114 = vunpack.c.l.b16 %v1078
  %v1115 = vunpack.c.l.b16 %v1079
  %v1116 = vunpack.c.l.b16 %v1080
  %v1117 = vunpack.c.l.b16 %v1081
  %v1118 = vunpack.c.l.b16 %v1082
  %v1119 = vunpack.c.l.b16 %v1083
  %v1120 = vunpack.c.l.b16 %v1084
  %v1121 = vunpack.c.l.b16 %v1085
  %v1122 = vunpack.c.l.b16 %v1086
  %v1123 = vunpack.c.l.b16 %v1087
  %v1124 = vunpack.c.l.b16 %v1088
  %v1125 = vpack.c.b16 %v1110, %v1109
  %v1126 = vpack.c.b16 %v1112, %v1111
  %v1127 = vpack.c.b16 %v1114, %v1113
  %v1128 = vpack.c.b16 %v1116, %v1115
  %v1129 = vpack.c.b16 %v1118, %v1117
  %v1130 = vpack.c.b16 %v1120, %v1119
  %v1131 = vpack.c.b16 %v1122, %v1121
  %v1132 = vpack.c.b16 %v1124, %v1123
  %1141 = vmatpush.bf16.msra.mxu0 %v1132
  %1142 = vmatpush.bf16.msra.mxu0 %v1131
  %1143 = vmatpush.bf16.msra.mxu0 %v1130
  %1144 = vmatpush.bf16.msra.mxu0 %v1129
  %1145 = vmatpush.bf16.msra.mxu0 %v1128
  %1146 = vmatpush.bf16.msra.mxu0 %v1127
  %1147 = vmatpush.bf16.msra.mxu0 %v1126
  %1148 = vmatpush.bf16.msra.mxu0 %v1125
  %1149 = vmatmul.bf16.gmra.mxu0 %v1065
  %v1150 = vpop.f32.mrf.mxu0
  %v1151 = vadd.f32 %v1091, %v1150
  %v1152 = vpop.f32.mrf.mxu0
  %v1153 = vadd.f32 %v1091, %v1152
  %1154 = vmatmul.bf16.gmra.mxu0 %v1066
  %v1155 = vpop.f32.mrf.mxu0
  %v1156 = vadd.f32 %v1091, %v1155
  %v1157 = vpop.f32.mrf.mxu0
  %v1158 = vadd.f32 %v1091, %v1157
  %1159 = vmatmul.bf16.gmra.mxu0 %v1067
  %v1160 = vpop.f32.mrf.mxu0
  %v1161 = vadd.f32 %v1091, %v1160
  %v1162 = vpop.f32.mrf.mxu0
  %v1163 = vadd.f32 %v1091, %v1162
  %1164 = vmatmul.bf16.gmra.mxu0 %v1068
  %v1165 = vpop.f32.mrf.mxu0
  %v1166 = vadd.f32 %v1091, %v1165
  %v1167 = vpop.f32.mrf.mxu0
  %v1168 = vadd.f32 %v1091, %v1167
  %1169 = vmatmul.bf16.gmra.mxu0 %v1069
  %v1170 = vpop.f32.mrf.mxu0
  %v1171 = vadd.f32 %v1091, %v1170
  %v1172 = vpop.f32.mrf.mxu0
  %v1173 = vadd.f32 %v1091, %v1172
  %1174 = vmatmul.bf16.gmra.mxu0 %v1070
  %v1175 = vpop.f32.mrf.mxu0
  %v1176 = vadd.f32 %v1091, %v1175
  %v1177 = vpop.f32.mrf.mxu0
  %v1178 = vadd.f32 %v1091, %v1177
  %1179 = vmatmul.bf16.gmra.mxu0 %v1071
  %v1180 = vpop.f32.mrf.mxu0
  %v1181 = vadd.f32 %v1091, %v1180
  %v1182 = vpop.f32.mrf.mxu0
  %v1183 = vadd.f32 %v1091, %v1182
  %1184 = vmatmul.bf16.gmra.mxu0 %v1072
  %v1185 = vpop.f32.mrf.mxu0
  %v1186 = vadd.f32 %v1091, %v1185
  %v1187 = vpop.f32.mrf.mxu0
  %v1188 = vadd.f32 %v1091, %v1187
  %1189 = vdwg.mxu0
  %vm1190 = vcmp.gt.f32.partialorder %v1151, 0.0
  %vm1191 = vcmp.gt.f32.partialorder %v1153, 0.0
  %vm1192 = vcmp.gt.f32.partialorder %v1156, 0.0
  %vm1193 = vcmp.gt.f32.partialorder %v1158, 0.0
  %vm1194 = vcmp.gt.f32.partialorder %v1161, 0.0
  %vm1195 = vcmp.gt.f32.partialorder %v1163, 0.0
  %vm1196 = vcmp.gt.f32.partialorder %v1166, 0.0
  %vm1197 = vcmp.gt.f32.partialorder %v1168, 0.0
  %vm1198 = vcmp.gt.f32.partialorder %v1171, 0.0
  %vm1199 = vcmp.gt.f32.partialorder %v1173, 0.0
  %vm1200 = vcmp.gt.f32.partialorder %v1176, 0.0
  %vm1201 = vcmp.gt.f32.partialorder %v1178, 0.0
  %vm1202 = vcmp.gt.f32.partialorder %v1181, 0.0
  %vm1203 = vcmp.gt.f32.partialorder %v1183, 0.0
  %vm1204 = vcmp.gt.f32.partialorder %v1186, 0.0
  %vm1205 = vcmp.gt.f32.partialorder %v1188, 0.0
  %v1206 = vmin.f32 %v1151, 0.0
  %v1207 = vmin.f32 %v1153, 0.0
  %v1208 = vmin.f32 %v1156, 0.0
  %v1209 = vmin.f32 %v1158, 0.0
  %v1210 = vmin.f32 %v1161, 0.0
  %v1211 = vmin.f32 %v1163, 0.0
  %v1212 = vmin.f32 %v1166, 0.0
  %v1213 = vmin.f32 %v1168, 0.0
  %v1214 = vmin.f32 %v1171, 0.0
  %v1215 = vmin.f32 %v1173, 0.0
  %v1216 = vmin.f32 %v1176, 0.0
  %v1217 = vmin.f32 %v1178, 0.0
  %v1218 = vmin.f32 %v1181, 0.0
  %v1219 = vmin.f32 %v1183, 0.0
  %v1220 = vmin.f32 %v1186, 0.0
  %v1221 = vmin.f32 %v1188, 0.0
  %v1222 = vmul.f32 %v1206, 1.442695
  %v1223 = vpow.pop %v1222
  %v1224 = vmul.f32 %v1207, 1.442695
  %v1225 = vpow.pop %v1224
  %v1226 = vmul.f32 %v1208, 1.442695
  %v1227 = vpow.pop %v1226
  %v1228 = vmul.f32 %v1209, 1.442695
  %v1229 = vpow.pop %v1228
  %v1230 = vmul.f32 %v1210, 1.442695
  %v1231 = vpow.pop %v1230
  %v1232 = vmul.f32 %v1211, 1.442695
  %v1233 = vpow.pop %v1232
  %v1234 = vmul.f32 %v1212, 1.442695
  %v1235 = vpow.pop %v1234
  %v1236 = vmul.f32 %v1213, 1.442695
  %v1237 = vpow.pop %v1236
  %v1238 = vmul.f32 %v1214, 1.442695
  %v1239 = vpow.pop %v1238
  %v1240 = vmul.f32 %v1215, 1.442695
  %v1241 = vpow.pop %v1240
  %v1242 = vmul.f32 %v1216, 1.442695
  %v1243 = vpow.pop %v1242
  %v1244 = vmul.f32 %v1217, 1.442695
  %v1245 = vpow.pop %v1244
  %v1246 = vmul.f32 %v1218, 1.442695
  %v1247 = vpow.pop %v1246
  %v1248 = vmul.f32 %v1219, 1.442695
  %v1249 = vpow.pop %v1248
  %v1250 = vmul.f32 %v1220, 1.442695
  %v1251 = vpow.pop %v1250
  %v1252 = vmul.f32 %v1221, 1.442695
  %v1253 = vpow.pop %v1252
  %v1254 = vsub.f32 %v1223, 1.0
  %v1255 = vsub.f32 %v1225, 1.0
  %v1256 = vsub.f32 %v1227, 1.0
  %v1257 = vsub.f32 %v1229, 1.0
  %v1258 = vsub.f32 %v1231, 1.0
  %v1259 = vsub.f32 %v1233, 1.0
  %v1260 = vsub.f32 %v1235, 1.0
  %v1261 = vsub.f32 %v1237, 1.0
  %v1262 = vsub.f32 %v1239, 1.0
  %v1263 = vsub.f32 %v1241, 1.0
  %v1264 = vsub.f32 %v1243, 1.0
  %v1265 = vsub.f32 %v1245, 1.0
  %v1266 = vsub.f32 %v1247, 1.0
  %v1267 = vsub.f32 %v1249, 1.0
  %v1268 = vsub.f32 %v1251, 1.0
  %v1269 = vsub.f32 %v1253, 1.0
  %v1270 = vsel %vm1190, %v1151, %v1254
  %v1271 = vsel %vm1191, %v1153, %v1255
  %v1272 = vsel %vm1192, %v1156, %v1256
  %v1273 = vsel %vm1193, %v1158, %v1257
  %v1274 = vsel %vm1194, %v1161, %v1258
  %v1275 = vsel %vm1195, %v1163, %v1259
  %v1276 = vsel %vm1196, %v1166, %v1260
  %v1277 = vsel %vm1197, %v1168, %v1261
  %v1278 = vsel %vm1198, %v1171, %v1262
  %v1279 = vsel %vm1199, %v1173, %v1263
  %v1280 = vsel %vm1200, %v1176, %v1264
  %v1281 = vsel %vm1201, %v1178, %v1265
  %v1282 = vsel %vm1202, %v1181, %v1266
  %v1283 = vsel %vm1203, %v1183, %v1267
  %v1284 = vsel %vm1204, %v1186, %v1268
  %v1285 = vsel %vm1205, %v1188, %v1269
  %v1286 = vpack.c.bf16 %v1271, %v1270
  %v1287 = vpack.c.bf16 %v1273, %v1272
  %v1288 = vpack.c.bf16 %v1275, %v1274
  %v1289 = vpack.c.bf16 %v1277, %v1276
  %v1290 = vpack.c.bf16 %v1279, %v1278
  %v1291 = vpack.c.bf16 %v1281, %v1280
  %v1292 = vpack.c.bf16 %v1283, %v1282
  %v1293 = vpack.c.bf16 %v1285, %v1284
  %v1294 = vld [vmem:[%s8] sm:$0xf]
  %v1295 = vld [vmem:[%s8 + $0x4] sm:$0xf]
  %v1296 = vld [vmem:[%s8 + $0x8] sm:$0xf]
  %v1297 = vld [vmem:[%s8 + $0xc] sm:$0xf]
  %v1298 = vld [vmem:[%s8 + $0x10] sm:$0xf]
  %v1299 = vld [vmem:[%s8 + $0x14] sm:$0xf]
  %v1300 = vld [vmem:[%s8 + $0x18] sm:$0xf]
  %v1301 = vld [vmem:[%s8 + $0x1c] sm:$0xf]
  %v1302 = vld [vmem:[%s8 + $0x20] sm:$0xf]
  %v1303 = vld [vmem:[%s8 + $0x24] sm:$0xf]
  %v1304 = vld [vmem:[%s8 + $0x28] sm:$0xf]
  %v1305 = vld [vmem:[%s8 + $0x2c] sm:$0xf]
  %v1306 = vld [vmem:[%s8 + $0x30] sm:$0xf]
  %v1307 = vld [vmem:[%s8 + $0x34] sm:$0xf]
  %v1308 = vld [vmem:[%s8 + $0x38] sm:$0xf]
  %v1309 = vld [vmem:[%s8 + $0x3c] sm:$0xf]
  %v1310 = vld [vmem:[%s9] sm:$0x1]
  %v1312 = vperm.slane %v1310, 0
  %v1330 = vunpack.c.l.b16 %v1294
  %v1331 = vunpack.c.l.b16 %v1295
  %v1332 = vunpack.c.l.b16 %v1296
  %v1333 = vunpack.c.l.b16 %v1297
  %v1334 = vunpack.c.l.b16 %v1298
  %v1335 = vunpack.c.l.b16 %v1299
  %v1336 = vunpack.c.l.b16 %v1300
  %v1337 = vunpack.c.l.b16 %v1301
  %v1338 = vunpack.c.l.b16 %v1302
  %v1339 = vunpack.c.l.b16 %v1303
  %v1340 = vunpack.c.l.b16 %v1304
  %v1341 = vunpack.c.l.b16 %v1305
  %v1342 = vunpack.c.l.b16 %v1306
  %v1343 = vunpack.c.l.b16 %v1307
  %v1344 = vunpack.c.l.b16 %v1308
  %v1345 = vunpack.c.l.b16 %v1309
  %v1346 = vpack.c.b16 %v1331, %v1330
  %v1347 = vpack.c.b16 %v1333, %v1332
  %v1348 = vpack.c.b16 %v1335, %v1334
  %v1349 = vpack.c.b16 %v1337, %v1336
  %v1350 = vpack.c.b16 %v1339, %v1338
  %v1351 = vpack.c.b16 %v1341, %v1340
  %v1352 = vpack.c.b16 %v1343, %v1342
  %v1353 = vpack.c.b16 %v1345, %v1344
  %1362 = vmatpush.bf16.msra.mxu0 %v1353
  %1363 = vmatpush.bf16.msra.mxu0 %v1352
  %1364 = vmatpush.bf16.msra.mxu0 %v1351
  %1365 = vmatpush.bf16.msra.mxu0 %v1350
  %1366 = vmatpush.bf16.msra.mxu0 %v1349
  %1367 = vmatpush.bf16.msra.mxu0 %v1348
  %1368 = vmatpush.bf16.msra.mxu0 %v1347
  %1369 = vmatpush.bf16.msra.mxu0 %v1346
  %1370 = vmatmul.bf16.gmra.mxu0 %v1286
  %v1371 = vpop.f32.mrf.mxu0
  %v1372 = vadd.f32 %v1312, %v1371
  %v1373 = vpop.f32.mrf.mxu0
  %v1374 = vadd.f32 %v1312, %v1373
  %1375 = vmatmul.bf16.gmra.mxu0 %v1287
  %v1376 = vpop.f32.mrf.mxu0
  %v1377 = vadd.f32 %v1312, %v1376
  %v1378 = vpop.f32.mrf.mxu0
  %v1379 = vadd.f32 %v1312, %v1378
  %1380 = vmatmul.bf16.gmra.mxu0 %v1288
  %v1381 = vpop.f32.mrf.mxu0
  %v1382 = vadd.f32 %v1312, %v1381
  %v1383 = vpop.f32.mrf.mxu0
  %v1384 = vadd.f32 %v1312, %v1383
  %1385 = vmatmul.bf16.gmra.mxu0 %v1289
  %v1386 = vpop.f32.mrf.mxu0
  %v1387 = vadd.f32 %v1312, %v1386
  %v1388 = vpop.f32.mrf.mxu0
  %v1389 = vadd.f32 %v1312, %v1388
  %1390 = vmatmul.bf16.gmra.mxu0 %v1290
  %v1391 = vpop.f32.mrf.mxu0
  %v1392 = vadd.f32 %v1312, %v1391
  %v1393 = vpop.f32.mrf.mxu0
  %v1394 = vadd.f32 %v1312, %v1393
  %1395 = vmatmul.bf16.gmra.mxu0 %v1291
  %v1396 = vpop.f32.mrf.mxu0
  %v1397 = vadd.f32 %v1312, %v1396
  %v1398 = vpop.f32.mrf.mxu0
  %v1399 = vadd.f32 %v1312, %v1398
  %1400 = vmatmul.bf16.gmra.mxu0 %v1292
  %v1401 = vpop.f32.mrf.mxu0
  %v1402 = vadd.f32 %v1312, %v1401
  %v1403 = vpop.f32.mrf.mxu0
  %v1404 = vadd.f32 %v1312, %v1403
  %1405 = vmatmul.bf16.gmra.mxu0 %v1293
  %v1406 = vpop.f32.mrf.mxu0
  %v1407 = vadd.f32 %v1312, %v1406
  %v1408 = vpop.f32.mrf.mxu0
  %v1409 = vadd.f32 %v1312, %v1408
  %1410 = vdwg.mxu0
  %1411 = vst [vmem:[%s10 + $0x10] sm:$0xff] %v1372
  %1412 = vst [vmem:[%s10 + $0x28] sm:$0xff] %v1374
  %1413 = vst [vmem:[%s10 + $0x40] sm:$0xff] %v1377
  %1414 = vst [vmem:[%s10 + $0x58] sm:$0xff] %v1379
  %1415 = vst [vmem:[%s10 + $0x70] sm:$0xff] %v1382
  %1416 = vst [vmem:[%s10 + $0x88] sm:$0xff] %v1384
  %1417 = vst [vmem:[%s10 + $0xa0] sm:$0xff] %v1387
  %1418 = vst [vmem:[%s10 + $0xb8] sm:$0xff] %v1389
  %1419 = vst [vmem:[%s10 + $0xd0] sm:$0xff] %v1392
  %1420 = vst [vmem:[%s10 + $0xe8] sm:$0xff] %v1394
  %1421 = vst [vmem:[%s10 + $0x100] sm:$0xff] %v1397
  %1422 = vst [vmem:[%s10 + $0x118] sm:$0xff] %v1399
  %1423 = vst [vmem:[%s10 + $0x130] sm:$0xff] %v1402
  %1424 = vst [vmem:[%s10 + $0x148] sm:$0xff] %v1404
  %1425 = vst [vmem:[%s10 + $0x160] sm:$0xff] %v1407
  %1426 = vst [vmem:[%s10 + $0x178] sm:$0xff] %v1409
  // Predicated region
  $region42: #{mgcl_forward.1} parent=0 // pred_check
    _
  $region43: #{mgcl_forward.1} parent=0 // pred_check_branch
    %1428 = sbr.rel (0) target = $region45
  $region44: #{mgcl_forward.1} parent=0 // pred_region
    _
  $region45: #{mgcl_forward.1} parent=0 // pred_fallthru
    _
  // Predicated region
  $region46: #{mgcl_forward.1} parent=0 // pred_check
    _
  $region47: #{mgcl_forward.1} parent=0 // pred_check_branch
    %1430 = sbr.rel (0) target = $region49
  $region48: #{mgcl_forward.1} parent=0 // pred_region
    _
  $region49: #{mgcl_forward.1} parent=0 // pred_fallthru
    _

</llo_original>
